<compile_context>
chip_gen: v7x
topology: tpu7x:2x2x1
jax: 0.10.0
libtpu: 0.0.40
codegen_flags: <defaults>
</compile_context>

<pallas_src>
import math

import jax
import jax.numpy as jnp
from jax.experimental import pallas as pl
from jax.experimental.pallas import tpu as pltpu


# ----------------------------------------------------------------------------
# Kernels
# ----------------------------------------------------------------------------
def _blend(wa, wb, a_ref, b_ref, o_ref):
    ya = jnp.maximum(a_ref[...].astype(jnp.float32), 0.0)
    yb = jnp.maximum(b_ref[...].astype(jnp.float32), 0.0)
    o_ref[...] = (wa * ya + wb * yb).astype(o_ref.dtype)


def _fuse_pair_kernel(w_ref, xa_ref, xb_ref, o_ref):
    # w_ref: (2,) f32 in SMEM (scalar prefetch)
    _blend(w_ref[0], w_ref[1], xa_ref, xb_ref, o_ref)


def _fuse_three_kernel(w_ref, a1, b1, a2, b2, a3, b3, o1, o2, o3):
    # w_ref: (6,) f32 in SMEM (scalar prefetch) = [w11, w12, w21, w22, w31, w32]
    _blend(w_ref[0], w_ref[1], a1, b1, o1)
    _blend(w_ref[2], w_ref[3], a2, b2, o2)
    _blend(w_ref[4], w_ref[5], a3, b3, o3)


# ----------------------------------------------------------------------------
# Tiling helpers
# ----------------------------------------------------------------------------
def _choose_2d(shape):
    """Lane-dense 2-D view of the flattened tensor: last dim a multiple of 128
    when possible (unmasked vst), otherwise fall back to the natural trailing
    dim."""
    e = math.prod(shape)
    for c in (2048, 1024, 512, 256, 128):
        if e % c == 0:
            return e // c, c
    c = shape[-1]
    return e // c, c


def _pick_row_tile(rows, cols, itemsize, n_arrays):
    """Largest row tile that divides `rows`, is a multiple of 8 (or equals the
    full dim), and keeps `n_arrays` double-buffered blocks under ~24 MiB total
    (safe inside a 32 MiB scoped VMEM limit on v5e/v6e/v7x)."""
    budget = 24 * 1024 * 1024
    cap = max(8, budget // max(1, 2 * n_arrays * cols * itemsize))
    if rows <= cap:
        return rows
    t = (cap // 8) * 8
    while t >= 8:
        if rows % t == 0:
            return t
        t -= 8
    return rows  # no aligned divisor: take the full dim (always legal)


def _compiler_params():
    return pltpu.CompilerParams(
        dimension_semantics=("parallel",),       # megacore sharding on v7x
        vmem_limit_bytes=32 * 1024 * 1024,
    )


def _softmax2(m):
    # Same exp/sum formulation as the torch module (no max subtraction).
    e = jnp.exp(m.astype(jnp.float32))
    return e / jnp.sum(e)


# ----------------------------------------------------------------------------
# Wrappers
# ----------------------------------------------------------------------------
def _fused_pair(xa, xb, w2):
    """softmax-weighted ReLU blend of one pair (fallback path)."""
    rows, cols = _choose_2d(xa.shape)
    xa2 = xa.reshape(rows, cols)
    xb2 = xb.reshape(rows, cols)
    tr = _pick_row_tile(rows, cols, xa.dtype.itemsize, n_arrays=3)
    grid = (rows // tr,)

    out = pl.pallas_call(
        _fuse_pair_kernel,
        out_shape=jax.ShapeDtypeStruct((rows, cols), xa.dtype),
        grid_spec=pltpu.PrefetchScalarGridSpec(
            num_scalar_prefetch=1,
            grid=grid,
            in_specs=[
                pl.BlockSpec((tr, cols), lambda i, w_ref: (i, 0)),
                pl.BlockSpec((tr, cols), lambda i, w_ref: (i, 0)),
            ],
            out_specs=pl.BlockSpec((tr, cols), lambda i, w_ref: (i, 0)),
        ),
        compiler_params=_compiler_params(),
    )(w2, xa2, xb2)
    return out.reshape(xa.shape)


def _fused_three(x1, x2, x3, x4, x5, x6, w6):
    """All three pairs in one pallas_call (same-shape fast path)."""
    shape, dtype = x1.shape, x1.dtype
    rows, cols = _choose_2d(shape)
    xs = [x.reshape(rows, cols) for x in (x1, x2, x3, x4, x5, x6)]
    # 6 inputs + 3 outputs live per grid step.
    tr = _pick_row_tile(rows, cols, dtype.itemsize, n_arrays=9)
    grid = (rows // tr,)

    spec = pl.BlockSpec((tr, cols), lambda i, w_ref: (i, 0))
    o1, o2, o3 = pl.pallas_call(
        _fuse_three_kernel,
        out_shape=tuple(jax.ShapeDtypeStruct((rows, cols), dtype) for _ in range(3)),
        grid_spec=pltpu.PrefetchScalarGridSpec(
            num_scalar_prefetch=1,
            grid=grid,
            in_specs=[spec] * 6,
            out_specs=[spec] * 3,
        ),
        compiler_params=_compiler_params(),
    )(w6, *xs)
    return o1.reshape(shape), o2.reshape(shape), o3.reshape(shape)


# ----------------------------------------------------------------------------
# module W
# ----------------------------------------------------------------------------
def init_params():
    # Matches nn.Parameter(torch.ones(2)) for m1 / m2 / m3.
    return {"m1": jnp.ones((2,), jnp.float32),
            "m2": jnp.ones((2,), jnp.float32),
            "m3": jnp.ones((2,), jnp.float32)}


def w_forward(params, x1, x2, x3, x4, x5, x6):
    # torch's ReLU(inplace=True) mutation of the inputs is not observable in
    # the returned tuple; functional outputs are identical.
    w1 = _softmax2(params["m1"])
    w2 = _softmax2(params["m2"])
    w3 = _softmax2(params["m3"])

    if x1.shape == x2.shape == x3.shape == x4.shape == x5.shape == x6.shape:
        w6 = jnp.concatenate([w1, w2, w3])           # single SMEM prefetch
        return _fused_three(x1, x2, x3, x4, x5, x6, w6)

    # Mismatched shapes (different FuseNet stages): one streaming pass / pair.
    assert x1.shape == x2.shape and x3.shape == x4.shape and x5.shape == x6.shape
    return (_fused_pair(x1, x2, w1),
            _fused_pair(x3, x4, w2),
            _fused_pair(x5, x6, w3))


# plain-JAX reference for a correctness check
def _ref_forward(params, x1, x2, x3, x4, x5, x6):
    def blend(a, b, m):
        e = jnp.exp(m)
        w = e / jnp.sum(e)
        return w[0] * jnp.maximum(a, 0.0) + w[1] * jnp.maximum(b, 0.0)
    return (blend(x1, x2, params["m1"]),
            blend(x3, x4, params["m2"]),
            blend(x5, x6, params["m3"]))


# ----------------------------------------------------------------------------
if __name__ == "__main__":
    key = jax.random.PRNGKey(0)
    keys = jax.random.split(key, 9)

    shape = (2, 4, 16, 16)           # small (B, C, H, W) feature maps
    xs = [jax.random.normal(keys[i], shape, jnp.float32) for i in range(6)]

    # Module init is ones; perturb slightly (deterministically) so the softmax
    # weights are non-trivial for the correctness check.
    params = init_params()
    params = {k: v + 0.3 * jax.random.normal(keys[6 + i], (2,), jnp.float32)
              for i, (k, v) in enumerate(sorted(params.items()))}

    fwd = jax.jit(w_forward)
    outs = jax.block_until_ready(fwd(params, *xs))

    refs = _ref_forward(params, *xs)
    for o, r in zip(outs, refs):
        assert o.shape == shape, o.shape
        assert bool(jnp.all(jnp.isfinite(o)))
        err = float(jnp.max(jnp.abs(o - r)))
        assert err < 1e-5, err

    # Also exercise the per-pair fallback path once (mismatched-shape branch
    # is selected structurally, so just sanity check the helper).
    w1 = _softmax2(params["m1"])
    p = _fused_pair(xs[0], xs[1], w1)
    assert float(jnp.max(jnp.abs(p - refs[0]))) < 1e-5
    print("KERNEL_OK")
</pallas_src>

<mosaic_0001>
module attributes {stable_mosaic.version = 11 : i64} {
  func.func @_fuse_three_kernel(%arg0: i32, %arg1: memref<6xf32, #tpu.memory_space<smem>>, %arg2: memref<1x2048xf32, #tpu.memory_space<vmem>>, %arg3: memref<1x2048xf32, #tpu.memory_space<vmem>>, %arg4: memref<1x2048xf32, #tpu.memory_space<vmem>>, %arg5: memref<1x2048xf32, #tpu.memory_space<vmem>>, %arg6: memref<1x2048xf32, #tpu.memory_space<vmem>>, %arg7: memref<1x2048xf32, #tpu.memory_space<vmem>>, %arg8: memref<1x2048xf32, #tpu.memory_space<vmem>>, %arg9: memref<1x2048xf32, #tpu.memory_space<vmem>>, %arg10: memref<1x2048xf32, #tpu.memory_space<vmem>>) attributes {dimension_semantics = [#tpu.dimension_semantics<parallel>], iteration_bounds = array<i64: 1>, scalar_prefetch = 1 : i64, scratch_operands = 0 : i64, tpu.core_type = #tpu.core_type<tc>, window_params = [{transform_indices = @transform_0, window_bounds = array<i64: 1, 2048>}, {transform_indices = @transform_1, window_bounds = array<i64: 1, 2048>}, {transform_indices = @transform_2, window_bounds = array<i64: 1, 2048>}, {transform_indices = @transform_3, window_bounds = array<i64: 1, 2048>}, {transform_indices = @transform_4, window_bounds = array<i64: 1, 2048>}, {transform_indices = @transform_5, window_bounds = array<i64: 1, 2048>}, {transform_indices = @transform_6, window_bounds = array<i64: 1, 2048>}, {transform_indices = @transform_7, window_bounds = array<i64: 1, 2048>}, {transform_indices = @transform_8, window_bounds = array<i64: 1, 2048>}]} {
    %c0 = arith.constant 0 : index
    %0 = memref.load %arg1[%c0] : memref<6xf32, #tpu.memory_space<smem>>
    %c1 = arith.constant 1 : index
    %1 = memref.load %arg1[%c1] : memref<6xf32, #tpu.memory_space<smem>>
    %c0_0 = arith.constant 0 : index
    %c0_1 = arith.constant 0 : index
    %2 = vector.load %arg2[%c0_0, %c0_1] : memref<1x2048xf32, #tpu.memory_space<vmem>>, vector<1x2048xf32>
    %cst = arith.constant 0.000000e+00 : f32
    %3 = vector.broadcast %cst : f32 to vector<1x2048xf32>
    %4 = arith.maximumf %2, %3 : vector<1x2048xf32>
    %c0_2 = arith.constant 0 : index
    %c0_3 = arith.constant 0 : index
    %5 = vector.load %arg3[%c0_2, %c0_3] : memref<1x2048xf32, #tpu.memory_space<vmem>>, vector<1x2048xf32>
    %cst_4 = arith.constant 0.000000e+00 : f32
    %6 = vector.broadcast %cst_4 : f32 to vector<1x2048xf32>
    %7 = arith.maximumf %5, %6 : vector<1x2048xf32>
    %8 = vector.broadcast %0 : f32 to vector<1x2048xf32>
    %9 = arith.mulf %8, %4 : vector<1x2048xf32>
    %10 = vector.broadcast %1 : f32 to vector<1x2048xf32>
    %11 = arith.mulf %10, %7 : vector<1x2048xf32>
    %12 = arith.addf %9, %11 : vector<1x2048xf32>
    %c0_5 = arith.constant 0 : index
    %c0_6 = arith.constant 0 : index
    %13 = vector.load %arg8[%c0_5, %c0_6] : memref<1x2048xf32, #tpu.memory_space<vmem>>, vector<1x2048xf32>
    tpu.vector_store %arg8[%c0_5, %c0_6], %12 {strides = array<i32>} : memref<1x2048xf32, #tpu.memory_space<vmem>>, vector<1x2048xf32>,
    %c2 = arith.constant 2 : index
    %14 = memref.load %arg1[%c2] : memref<6xf32, #tpu.memory_space<smem>>
    %c3 = arith.constant 3 : index
    %15 = memref.load %arg1[%c3] : memref<6xf32, #tpu.memory_space<smem>>
    %c0_7 = arith.constant 0 : index
    %c0_8 = arith.constant 0 : index
    %16 = vector.load %arg4[%c0_7, %c0_8] : memref<1x2048xf32, #tpu.memory_space<vmem>>, vector<1x2048xf32>
    %cst_9 = arith.constant 0.000000e+00 : f32
    %17 = vector.broadcast %cst_9 : f32 to vector<1x2048xf32>
    %18 = arith.maximumf %16, %17 : vector<1x2048xf32>
    %c0_10 = arith.constant 0 : index
    %c0_11 = arith.constant 0 : index
    %19 = vector.load %arg5[%c0_10, %c0_11] : memref<1x2048xf32, #tpu.memory_space<vmem>>, vector<1x2048xf32>
    %cst_12 = arith.constant 0.000000e+00 : f32
    %20 = vector.broadcast %cst_12 : f32 to vector<1x2048xf32>
    %21 = arith.maximumf %19, %20 : vector<1x2048xf32>
    %22 = vector.broadcast %14 : f32 to vector<1x2048xf32>
    %23 = arith.mulf %22, %18 : vector<1x2048xf32>
    %24 = vector.broadcast %15 : f32 to vector<1x2048xf32>
    %25 = arith.mulf %24, %21 : vector<1x2048xf32>
    %26 = arith.addf %23, %25 : vector<1x2048xf32>
    %c0_13 = arith.constant 0 : index
    %c0_14 = arith.constant 0 : index
    %27 = vector.load %arg9[%c0_13, %c0_14] : memref<1x2048xf32, #tpu.memory_space<vmem>>, vector<1x2048xf32>
    tpu.vector_store %arg9[%c0_13, %c0_14], %26 {strides = array<i32>} : memref<1x2048xf32, #tpu.memory_space<vmem>>, vector<1x2048xf32>,
    %c4 = arith.constant 4 : index
    %28 = memref.load %arg1[%c4] : memref<6xf32, #tpu.memory_space<smem>>
    %c5 = arith.constant 5 : index
    %29 = memref.load %arg1[%c5] : memref<6xf32, #tpu.memory_space<smem>>
    %c0_15 = arith.constant 0 : index
    %c0_16 = arith.constant 0 : index
    %30 = vector.load %arg6[%c0_15, %c0_16] : memref<1x2048xf32, #tpu.memory_space<vmem>>, vector<1x2048xf32>
    %cst_17 = arith.constant 0.000000e+00 : f32
    %31 = vector.broadcast %cst_17 : f32 to vector<1x2048xf32>
    %32 = arith.maximumf %30, %31 : vector<1x2048xf32>
    %c0_18 = arith.constant 0 : index
    %c0_19 = arith.constant 0 : index
    %33 = vector.load %arg7[%c0_18, %c0_19] : memref<1x2048xf32, #tpu.memory_space<vmem>>, vector<1x2048xf32>
    %cst_20 = arith.constant 0.000000e+00 : f32
    %34 = vector.broadcast %cst_20 : f32 to vector<1x2048xf32>
    %35 = arith.maximumf %33, %34 : vector<1x2048xf32>
    %36 = vector.broadcast %28 : f32 to vector<1x2048xf32>
    %37 = arith.mulf %36, %32 : vector<1x2048xf32>
    %38 = vector.broadcast %29 : f32 to vector<1x2048xf32>
    %39 = arith.mulf %38, %35 : vector<1x2048xf32>
    %40 = arith.addf %37, %39 : vector<1x2048xf32>
    %c0_21 = arith.constant 0 : index
    %c0_22 = arith.constant 0 : index
    %41 = vector.load %arg10[%c0_21, %c0_22] : memref<1x2048xf32, #tpu.memory_space<vmem>>, vector<1x2048xf32>
    tpu.vector_store %arg10[%c0_21, %c0_22], %40 {strides = array<i32>} : memref<1x2048xf32, #tpu.memory_space<vmem>>, vector<1x2048xf32>,
    return
  }
  func.func @transform_0(%arg0: i32, %arg1: memref<6xf32, #tpu.memory_space<smem>>) -> (i32, i32) {
    %c0_i32 = arith.constant 0 : i32
    %c0_i32_0 = arith.constant 0 : i32
    return %arg0, %c0_i32 : i32, i32
  }
  func.func @transform_1(%arg0: i32, %arg1: memref<6xf32, #tpu.memory_space<smem>>) -> (i32, i32) {
    %c0_i32 = arith.constant 0 : i32
    %c0_i32_0 = arith.constant 0 : i32
    return %arg0, %c0_i32 : i32, i32
  }
  func.func @transform_2(%arg0: i32, %arg1: memref<6xf32, #tpu.memory_space<smem>>) -> (i32, i32) {
    %c0_i32 = arith.constant 0 : i32
    %c0_i32_0 = arith.constant 0 : i32
    return %arg0, %c0_i32 : i32, i32
  }
  func.func @transform_3(%arg0: i32, %arg1: memref<6xf32, #tpu.memory_space<smem>>) -> (i32, i32) {
    %c0_i32 = arith.constant 0 : i32
    %c0_i32_0 = arith.constant 0 : i32
    return %arg0, %c0_i32 : i32, i32
  }
  func.func @transform_4(%arg0: i32, %arg1: memref<6xf32, #tpu.memory_space<smem>>) -> (i32, i32) {
    %c0_i32 = arith.constant 0 : i32
    %c0_i32_0 = arith.constant 0 : i32
    return %arg0, %c0_i32 : i32, i32
  }
  func.func @transform_5(%arg0: i32, %arg1: memref<6xf32, #tpu.memory_space<smem>>) -> (i32, i32) {
    %c0_i32 = arith.constant 0 : i32
    %c0_i32_0 = arith.constant 0 : i32
    return %arg0, %c0_i32 : i32, i32
  }
  func.func @transform_6(%arg0: i32, %arg1: memref<6xf32, #tpu.memory_space<smem>>) -> (i32, i32) {
    %c0_i32 = arith.constant 0 : i32
    %c0_i32_0 = arith.constant 0 : i32
    return %arg0, %c0_i32 : i32, i32
  }
  func.func @transform_7(%arg0: i32, %arg1: memref<6xf32, #tpu.memory_space<smem>>) -> (i32, i32) {
    %c0_i32 = arith.constant 0 : i32
    %c0_i32_0 = arith.constant 0 : i32
    return %arg0, %c0_i32 : i32, i32
  }
  func.func @transform_8(%arg0: i32, %arg1: memref<6xf32, #tpu.memory_space<smem>>) -> (i32, i32) {
    %c0_i32 = arith.constant 0 : i32
    %c0_i32_0 = arith.constant 0 : i32
    return %arg0, %c0_i32 : i32, i32
  }
}

</mosaic_0001>

<llo_original>
// kernel: w_forward.1
$region0: #{w_forward.1}
  #allocation0 [shape = 'u32[]', space=smem, size = 0x4, offset = 0x4, fixed_abs, tag = 'smem constant byte address 0x4 - core index']
  #allocation1 [shape = 'u32[144,128]{1,0:T(1,128)}', space=vmem, size = 0x12000, scoped, tag = 'internal scratch']
  #allocation2 [shape = 's32[1]{0}', space=sflag, size = 0x4, scoped, tag = 'scoped memory for w_forward.1']
  #allocation3 [shape = 'u8[512]{0}', space=smem, size = 0x200, scoped, tag = 'prefetched SMEM operand 0']
  %s0 = inlined_call_operand.vmem [shape: f32[6], index: 0, kind: input, shape index: {}]
  %s1 = inlined_call_operand.vmem [shape: f32[1,2048], index: 1, kind: input, shape index: {}]
  %s2 = inlined_call_operand.vmem [shape: f32[1,2048], index: 2, kind: input, shape index: {}]
  %s3 = inlined_call_operand.vmem [shape: f32[1,2048], index: 3, kind: input, shape index: {}]
  %s4 = inlined_call_operand.vmem [shape: f32[1,2048], index: 4, kind: input, shape index: {}]
  %s5 = inlined_call_operand.vmem [shape: f32[1,2048], index: 5, kind: input, shape index: {}]
  %s6 = inlined_call_operand.vmem [shape: f32[1,2048], index: 6, kind: input, shape index: {}]
  %s7 = inlined_call_operand.vmem [shape: f32[1,2048], index: 7, kind: output, shape index: {0}]
  %s8 = inlined_call_operand.vmem [shape: f32[1,2048], index: 8, kind: output, shape index: {1}]
  %s9 = inlined_call_operand.vmem [shape: f32[1,2048], index: 9, kind: output, shape index: {2}]
  %10 = xla_tuple %s7, %s8, %s9
  %s11 = sld [smem:[#allocation0]]
  $region50: #{w_forward.1} parent=0
    _
  %s13 = ssub.s32 1, %s11
  %s14 = scalar_select 0, %s13, %s11
  %s15 = sshll.u32 %s0, 4
  %s16 = int_to_ptr.vmem [resolvable:$true] %s15
  %18 = dma.vmem_to_smem %s16, 16, [#allocation3], [#allocation2]
  %19 = dma.done [#allocation2], 16
  %20 = sfence
  // Predicated region
  $region2: #{w_forward.1} parent=0 // pred_check
    _
  $region3: #{w_forward.1} parent=0 // pred_check_branch
    %22 = sbr.rel (0) target = $region5
  $region4: #{w_forward.1} parent=0 // pred_region
    _
  $region5: #{w_forward.1} parent=0 // pred_fallthru
    _
  // Predicated region
  $region6: #{w_forward.1} parent=0 // pred_check
    _
  $region7: #{w_forward.1} parent=0 // pred_check_branch
    %24 = sbr.rel (0) target = $region9
  $region8: #{w_forward.1} parent=0 // pred_region
    _
  $region9: #{w_forward.1} parent=0 // pred_fallthru
    _
  // Predicated region
  $region10: #{w_forward.1} parent=0 // pred_check
    _
  $region11: #{w_forward.1} parent=0 // pred_check_branch
    %26 = sbr.rel (0) target = $region13
  $region12: #{w_forward.1} parent=0 // pred_region
    _
  $region13: #{w_forward.1} parent=0 // pred_fallthru
    _
  // Predicated region
  $region14: #{w_forward.1} parent=0 // pred_check
    _
  $region15: #{w_forward.1} parent=0 // pred_check_branch
    %28 = sbr.rel (0) target = $region17
  $region16: #{w_forward.1} parent=0 // pred_region
    _
  $region17: #{w_forward.1} parent=0 // pred_fallthru
    _
  // Predicated region
  $region18: #{w_forward.1} parent=0 // pred_check
    _
  $region19: #{w_forward.1} parent=0 // pred_check_branch
    %30 = sbr.rel (0) target = $region21
  $region20: #{w_forward.1} parent=0 // pred_region
    _
  $region21: #{w_forward.1} parent=0 // pred_fallthru
    _
  // Predicated region
  $region22: #{w_forward.1} parent=0 // pred_check
    _
  $region23: #{w_forward.1} parent=0 // pred_check_branch
    %32 = sbr.rel (0) target = $region25
  $region24: #{w_forward.1} parent=0 // pred_region
    _
  $region25: #{w_forward.1} parent=0 // pred_fallthru
    _
  %s33 = sld [smem:[#allocation3]]
  %s34 = sld [smem:[#allocation3 + $0x1]]
  %v35 = vld [vmem:[%s1] sm:$0xff]
  %v36 = vld [vmem:[%s1 + $0x8] sm:$0xff]
  %v37 = vmax.f32 %v35, 0.0
  %v38 = vmax.f32 %v36, 0.0
  %v39 = vld [vmem:[%s2] sm:$0xff]
  %v40 = vld [vmem:[%s2 + $0x8] sm:$0xff]
  %v41 = vmax.f32 %v39, 0.0
  %v42 = vmax.f32 %v40, 0.0
  %v43 = vstv %s33
  %v44 = vmul.f32 %v43, %v37
  %v45 = vmul.f32 %v43, %v38
  %v46 = vstv %s34
  %v47 = vmul.f32 %v46, %v41
  %v48 = vmul.f32 %v46, %v42
  %v49 = vadd.f32 %v44, %v47
  %v50 = vadd.f32 %v45, %v48
  %51 = vst [vmem:[%s7] sm:$0xff] %v49
  %52 = vst [vmem:[%s7 + $0x8] sm:$0xff] %v50
  %s53 = sld [smem:[#allocation3 + $0x2]]
  %s54 = sld [smem:[#allocation3 + $0x3]]
  %v55 = vld [vmem:[%s3] sm:$0xff]
  %v56 = vld [vmem:[%s3 + $0x8] sm:$0xff]
  %v57 = vmax.f32 %v55, 0.0
  %v58 = vmax.f32 %v56, 0.0
  %v59 = vld [vmem:[%s4] sm:$0xff]
  %v60 = vld [vmem:[%s4 + $0x8] sm:$0xff]
  %v61 = vmax.f32 %v59, 0.0
  %v62 = vmax.f32 %v60, 0.0
  %v63 = vstv %s53
  %v64 = vmul.f32 %v63, %v57
  %v65 = vmul.f32 %v63, %v58
  %v66 = vstv %s54
  %v67 = vmul.f32 %v66, %v61
  %v68 = vmul.f32 %v66, %v62
  %v69 = vadd.f32 %v64, %v67
  %v70 = vadd.f32 %v65, %v68
  %71 = vst [vmem:[%s8] sm:$0xff] %v69
  %72 = vst [vmem:[%s8 + $0x8] sm:$0xff] %v70
  %s73 = sld [smem:[#allocation3 + $0x4]]
  %s74 = sld [smem:[#allocation3 + $0x5]]
  %v75 = vld [vmem:[%s5] sm:$0xff]
  %v76 = vld [vmem:[%s5 + $0x8] sm:$0xff]
  %v77 = vmax.f32 %v75, 0.0
  %v78 = vmax.f32 %v76, 0.0
  %v79 = vld [vmem:[%s6] sm:$0xff]
  %v80 = vld [vmem:[%s6 + $0x8] sm:$0xff]
  %v81 = vmax.f32 %v79, 0.0
  %v82 = vmax.f32 %v80, 0.0
  %v83 = vstv %s73
  %v84 = vmul.f32 %v83, %v77
  %v85 = vmul.f32 %v83, %v78
  %v86 = vstv %s74
  %v87 = vmul.f32 %v86, %v81
  %v88 = vmul.f32 %v86, %v82
  %v89 = vadd.f32 %v84, %v87
  %v90 = vadd.f32 %v85, %v88
  %91 = vst [vmem:[%s9] sm:$0xff] %v89
  %92 = vst [vmem:[%s9 + $0x8] sm:$0xff] %v90
  // Predicated region
  $region26: #{w_forward.1} parent=0 // pred_check
    _
  $region27: #{w_forward.1} parent=0 // pred_check_branch
    %94 = sbr.rel (0) target = $region29
  $region28: #{w_forward.1} parent=0 // pred_region
    _
  $region29: #{w_forward.1} parent=0 // pred_fallthru
    _
  // Predicated region
  $region30: #{w_forward.1} parent=0 // pred_check
    _
  $region31: #{w_forward.1} parent=0 // pred_check_branch
    %96 = sbr.rel (0) target = $region33
  $region32: #{w_forward.1} parent=0 // pred_region
    _
  $region33: #{w_forward.1} parent=0 // pred_fallthru
    _
  // Predicated region
  $region34: #{w_forward.1} parent=0 // pred_check
    _
  $region35: #{w_forward.1} parent=0 // pred_check_branch
    %98 = sbr.rel (0) target = $region37
  $region36: #{w_forward.1} parent=0 // pred_region
    _
  $region37: #{w_forward.1} parent=0 // pred_fallthru
    _
  // Predicated region
  $region38: #{w_forward.1} parent=0 // pred_check
    _
  $region39: #{w_forward.1} parent=0 // pred_check_branch
    %100 = sbr.rel (0) target = $region41
  $region40: #{w_forward.1} parent=0 // pred_region
    _
  $region41: #{w_forward.1} parent=0 // pred_fallthru
    _
  // Predicated region
  $region42: #{w_forward.1} parent=0 // pred_check
    _
  $region43: #{w_forward.1} parent=0 // pred_check_branch
    %102 = sbr.rel (0) target = $region45
  $region44: #{w_forward.1} parent=0 // pred_region
    _
  $region45: #{w_forward.1} parent=0 // pred_fallthru
    _
  // Predicated region
  $region46: #{w_forward.1} parent=0 // pred_check
    _
  $region47: #{w_forward.1} parent=0 // pred_check_branch
    %104 = sbr.rel (0) target = $region49
  $region48: #{w_forward.1} parent=0 // pred_region
    _
  $region49: #{w_forward.1} parent=0 // pred_fallthru
    _

</llo_original>
